<compile_context>
chip_gen: v6e
topology: v6e:2x2x1
jax: 0.10.0
libtpu: 0.0.40
codegen_flags: <defaults>
</compile_context>

<pallas_src>
import functools

import jax
import jax.numpy as jnp
from jax import lax
from jax.experimental import pallas as pl
from jax.experimental.pallas import tpu as pltpu


def _round_up(n, m):
    return ((n + m - 1) // m) * m


def _silu(x):
    # x * sigmoid(x) == 0.5 * x * (1 + tanh(0.5 * x)): a single EUP op.
    return 0.5 * x * (1.0 + jnp.tanh(0.5 * x))


def _default_act_dtype():
    # bf16 VPU/EUP exists on v6e / v7x; v5e and older keep the f32 path.
    try:
        kind = jax.devices()[0].device_kind.lower()
    except Exception:
        return jnp.float32
    for old in ("v2", "v3", "v4", "v5"):
        if old in kind:
            return jnp.float32
    return jnp.bfloat16


def _pick_tiles(batch, batch_tile):
    """Choose (B_pad, tb, chunk, n_chunks).

    B_pad: batch padded to a multiple of 128 only (minimal padding waste).
    tb:    grid tile -- a multiple-of-128 divisor of B_pad, <= batch_tile,
           and <= B_pad/2 when possible so the parallel grid axis has >= 2
           steps (both v7x TensorCores get work).
    chunk: in-kernel lane-chunk width (<= 512) so the (H, chunk) f32
           activations stay bounded in the 64-vreg file.
    """
    b_pad = _round_up(batch, 128)
    m = b_pad // 128
    t_max = max(1, min(batch_tile // 128, m))
    if m >= 2:
        t_max = max(1, min(t_max, m // 2))
    t = 1
    for cand in range(t_max, 0, -1):
        if m % cand == 0:
            t = cand
            break
    tb = 128 * t
    chunk = 128
    for c in (512, 384, 256):
        if tb % c == 0:
            chunk = c
            break
    return b_pad, tb, chunk, tb // chunk


def _make_kernel(chunk, n_chunks, act_dtype):
    def kernel(x_ref, w1_ref, b1_ref, w2_ref, b2_ref, w3_ref, b3_ref, o_ref):
        #   x_ref : (tb, D)   natural layout (f32 or bf16)
        #   w1_ref: (H1, D)   w2_ref: (H2, H1)      (matmul dtype)
        #   b1_ref: (H1, 1)   b2_ref: (H2, 1)       (f32)
        #   w3_ref: (H2, 1)   b3_ref: (1, 1)        (f32)
        #   o_ref : (1, tb)   lane-dense output row
        w1 = w1_ref[...]
        b1 = b1_ref[...]
        w2 = w2_ref[...]
        b2 = b2_ref[...]
        w3 = w3_ref[...]
        b3 = b3_ref[...]
        mm_dtype = w1.dtype

        # Fully unrolled lane-chunk loop (static trip count, equivalent to
        # lax.fori_loop(..., unroll=True)): bounds the vreg working set while
        # the grid tile (and hence the grid-step count) stays large.
        for c in range(n_chunks):
            lo = c * chunk
            xc = x_ref[lo:lo + chunk, :].astype(mm_dtype)        # (chunk, D)

            # Layer 1: w1 @ xc^T via "NT" dot_general -- no materialized
            # transpose; the batch lands on the lane axis of the result.
            h1 = lax.dot_general(
                w1, xc, (((1,), (1,)), ((), ())),
                preferred_element_type=jnp.float32) + b1          # (H1, chunk)
            h1 = _silu(h1.astype(act_dtype))

            # Layer 2.
            h2 = jnp.dot(w2, h1.astype(mm_dtype),
                         preferred_element_type=jnp.float32) + b2  # (H2, chunk)
            h2 = _silu(h2.astype(act_dtype))

            # Output layer (out_features = 1): VPU multiply + sublane reduce,
            # avoids an N=1 MXU pass; store is lane dense.
            out = jnp.sum(h2.astype(jnp.float32) * w3,
                          axis=0, keepdims=True) + b3             # (1, chunk)
            o_ref[:, lo:lo + chunk] = out.astype(o_ref.dtype)

    return kernel


def prepare_params(params, matmul_dtype=jnp.bfloat16):
    """One-time transform of PyTorch-layout params (y = x @ W + b) into the
    kernel layout / dtypes.  Hoist this out of any training / eval loop."""
    return {
        "w1t": jnp.asarray(params["w1"]).T.astype(matmul_dtype),          # (H1, D)
        "b1t": jnp.asarray(params["b1"]).reshape(-1, 1).astype(jnp.float32),
        "w2t": jnp.asarray(params["w2"]).T.astype(matmul_dtype),          # (H2, H1)
        "b2t": jnp.asarray(params["b2"]).reshape(-1, 1).astype(jnp.float32),
        "w3": jnp.asarray(params["w3"]).reshape(-1, 1).astype(jnp.float32),  # (H2, 1)
        "b3": jnp.asarray(params["b3"]).reshape(1, 1).astype(jnp.float32),
    }


def critic_forward(x, params, *, batch_tile=2048, act_dtype=None):
    """Fused Critic MLP as a single pallas_call.

    x: (B, D). Any B accepted (padded to a multiple of 128 internally).
    params: either raw PyTorch-layout params (w1..b3) or the output of
            prepare_params (preferred: call prepare_params once, reuse).
    """
    prep = params if "w1t" in params else prepare_params(params)
    if act_dtype is None:
        act_dtype = _default_act_dtype()

    B, D = x.shape
    H1 = prep["w1t"].shape[0]
    H2 = prep["w2t"].shape[0]
    assert prep["w1t"].shape[1] == D

    B_pad, tb, chunk, n_chunks = _pick_tiles(B, batch_tile)
    x_pad = x if B_pad == B else jnp.pad(x, ((0, B_pad - B), (0, 0)))

    # Resident weights / biases: constant index map, full-array blocks.
    # TODO(synk): if hidden sizes grow, mark these pipeline_mode=pl.Buffered(1)
    # and budget VMEM explicitly (v7x scoped default is ~32 MiB of 64 MiB).
    full = lambda r, c: pl.BlockSpec((r, c), lambda i: (0, 0))

    kernel = _make_kernel(chunk, n_chunks, act_dtype)
    out = pl.pallas_call(
        kernel,
        out_shape=jax.ShapeDtypeStruct((1, B_pad), jnp.float32),
        grid_spec=pl.GridSpec(
            grid=(B_pad // tb,),
            in_specs=[
                pl.BlockSpec((tb, D), lambda i: (i, 0)),   # x, natural layout
                full(H1, D),    # w1^T
                full(H1, 1),    # b1
                full(H2, H1),   # w2^T
                full(H2, 1),    # b2
                full(H2, 1),    # w3
                full(1, 1),     # b3
            ],
            out_specs=pl.BlockSpec((1, tb), lambda i: (0, i)),  # lane-dense
        ),
        compiler_params=pltpu.CompilerParams(
            dimension_semantics=("parallel",),
        ),
    )(x_pad, prep["w1t"], prep["b1t"], prep["w2t"], prep["b2t"],
      prep["w3"], prep["b3"])

    # (1, B_pad) -> (B, 1)
    return out[0, :B].reshape(B, 1)


def init_params(key, data_dimension, hidden_layer_sizes):
    """Xavier-uniform-style init matching Critic.__init__ (dim -> hidden... -> 1)."""
    layer_sizes = [data_dimension] + list(hidden_layer_sizes) + [1]
    params = {}
    keys = jax.random.split(key, len(layer_sizes) - 1)
    for i, (fan_in, fan_out) in enumerate(zip(layer_sizes[:-1], layer_sizes[1:])):
        limit = jnp.sqrt(6.0 / (fan_in + fan_out))
        params[f"w{i + 1}"] = jax.random.uniform(
            keys[i], (fan_in, fan_out), jnp.float32, minval=-limit, maxval=limit)
        params[f"b{i + 1}"] = jnp.zeros((1, fan_out), jnp.float32)
    return params


def critic_reference(x, params):
    """Pure-JAX reference of the same MLP (PyTorch SiLU = x * sigmoid(x))."""
    h = x
    h = (h @ params["w1"] + params["b1"])
    h = h * jax.nn.sigmoid(h)
    h = (h @ params["w2"] + params["b2"])
    h = h * jax.nn.sigmoid(h)
    return h @ params["w3"] + params["b3"]


if __name__ == "__main__":
    data_dimension = 16
    hidden_layer_sizes = [32, 32]

    key = jax.random.PRNGKey(0)
    kx, kp, kx2 = jax.random.split(key, 3)
    params = init_params(kp, data_dimension, hidden_layer_sizes)

    # --- Small batch: grid=(1,), single lane chunk -------------------------
    batch = 16
    x = jax.random.normal(kx, (batch, data_dimension), jnp.float32)
    ref = critic_reference(x, params)

    # Tight check: f32 MXU operands + f32 activation path.
    prep_f32 = prepare_params(params, matmul_dtype=jnp.float32)
    out_f32 = jax.block_until_ready(
        critic_forward(x, prep_f32, act_dtype=jnp.float32))
    assert out_f32.shape == (batch, 1)
    assert jnp.allclose(out_f32, ref, atol=1e-4, rtol=1e-4)

    # Default perf path: bf16 MXU operands, chip-dependent SiLU dtype.
    prep = prepare_params(params)
    out_def = jax.block_until_ready(critic_forward(x, prep))
    assert out_def.shape == (batch, 1)
    assert jnp.allclose(out_def, ref, atol=1e-1, rtol=1e-1)

    # --- Larger batch: multi-step grid + in-kernel lane-chunk loop ---------
    # B=2048 -> B_pad=2048, tb=1024, grid=(2,), chunk=512, n_chunks=2.
    batch2 = 2048
    x2 = jax.random.normal(kx2, (batch2, data_dimension), jnp.float32)
    ref2 = critic_reference(x2, params)
    out2 = jax.block_until_ready(
        critic_forward(x2, prep_f32, act_dtype=jnp.float32))
    assert out2.shape == (batch2, 1)
    assert jnp.allclose(out2, ref2, atol=1e-4, rtol=1e-4)

    print("KERNEL_OK")
</pallas_src>

<mosaic_0001>
module attributes {stable_mosaic.version = 11 : i64} {
  func.func @kernel(%arg0: i32, %arg1: memref<128x16xf32, #tpu.memory_space<vmem>>, %arg2: memref<32x16xf32, #tpu.memory_space<vmem>>, %arg3: memref<32x1xf32, #tpu.memory_space<vmem>>, %arg4: memref<32x32xf32, #tpu.memory_space<vmem>>, %arg5: memref<32x1xf32, #tpu.memory_space<vmem>>, %arg6: memref<32x1xf32, #tpu.memory_space<vmem>>, %arg7: memref<1x1xf32, #tpu.memory_space<vmem>>, %arg8: memref<1x128xf32, #tpu.memory_space<vmem>>) attributes {dimension_semantics = [#tpu.dimension_semantics<parallel>], iteration_bounds = array<i64: 1>, scalar_prefetch = 0 : i64, scratch_operands = 0 : i64, tpu.core_type = #tpu.core_type<tc>, window_params = [{transform_indices = @transform_0, window_bounds = array<i64: 128, 16>}, {pipeline_mode = #tpu.pipeline_mode<synchronous>, transform_indices = @transform_1, window_bounds = array<i64: 32, 16>}, {pipeline_mode = #tpu.pipeline_mode<synchronous>, transform_indices = @transform_2, window_bounds = array<i64: 32, 1>}, {pipeline_mode = #tpu.pipeline_mode<synchronous>, transform_indices = @transform_3, window_bounds = array<i64: 32, 32>}, {pipeline_mode = #tpu.pipeline_mode<synchronous>, transform_indices = @transform_4, window_bounds = array<i64: 32, 1>}, {pipeline_mode = #tpu.pipeline_mode<synchronous>, transform_indices = @transform_5, window_bounds = array<i64: 32, 1>}, {pipeline_mode = #tpu.pipeline_mode<synchronous>, transform_indices = @transform_6, window_bounds = array<i64: 1, 1>}, {transform_indices = @transform_7, window_bounds = array<i64: 1, 128>}]} {
    %c0 = arith.constant 0 : index
    %c0_0 = arith.constant 0 : index
    %0 = vector.load %arg2[%c0, %c0_0] : memref<32x16xf32, #tpu.memory_space<vmem>>, vector<32x16xf32>
    %c0_1 = arith.constant 0 : index
    %c0_2 = arith.constant 0 : index
    %1 = vector.load %arg3[%c0_1, %c0_2] : memref<32x1xf32, #tpu.memory_space<vmem>>, vector<32x1xf32>
    %c0_3 = arith.constant 0 : index
    %c0_4 = arith.constant 0 : index
    %2 = vector.load %arg4[%c0_3, %c0_4] : memref<32x32xf32, #tpu.memory_space<vmem>>, vector<32x32xf32>
    %c0_5 = arith.constant 0 : index
    %c0_6 = arith.constant 0 : index
    %3 = vector.load %arg5[%c0_5, %c0_6] : memref<32x1xf32, #tpu.memory_space<vmem>>, vector<32x1xf32>
    %c0_7 = arith.constant 0 : index
    %c0_8 = arith.constant 0 : index
    %4 = vector.load %arg6[%c0_7, %c0_8] : memref<32x1xf32, #tpu.memory_space<vmem>>, vector<32x1xf32>
    %c0_9 = arith.constant 0 : index
    %c0_10 = arith.constant 0 : index
    %5 = vector.load %arg7[%c0_9, %c0_10] : memref<1x1xf32, #tpu.memory_space<vmem>>, vector<1x1xf32>
    %c0_11 = arith.constant 0 : index
    %c0_12 = arith.constant 0 : index
    %6 = vector.load %arg1[%c0_11, %c0_12] : memref<128x16xf32, #tpu.memory_space<vmem>>, vector<128x16xf32>
    %cst = arith.constant dense<0.000000e+00> : vector<32x128xf32>
    %7 = tpu.matmul %0, %6, %cst {dimension_numbers = #tpu.dot_dimension_numbers<[1], [1], [0], [0], [0, 0, 1, 0], [], []>} : vector<32x16xf32>, vector<128x16xf32>, vector<32x128xf32> -> vector<32x128xf32>
    %8 = vector.broadcast %1 : vector<32x1xf32> to vector<32x128xf32>
    %9 = arith.addf %7, %8 : vector<32x128xf32>
    %cst_13 = arith.constant 5.000000e-01 : f32
    %10 = vector.broadcast %cst_13 : f32 to vector<32x128xf32>
    %11 = arith.mulf %10, %9 : vector<32x128xf32>
    %cst_14 = arith.constant 5.000000e-01 : f32
    %12 = vector.broadcast %cst_14 : f32 to vector<32x128xf32>
    %13 = arith.mulf %12, %9 : vector<32x128xf32>
    %14 = math.tanh %13 : vector<32x128xf32>
    %cst_15 = arith.constant 1.000000e+00 : f32
    %15 = vector.broadcast %cst_15 : f32 to vector<32x128xf32>
    %16 = arith.addf %15, %14 : vector<32x128xf32>
    %17 = arith.mulf %11, %16 : vector<32x128xf32>
    %cst_16 = arith.constant dense<0.000000e+00> : vector<32x128xf32>
    %18 = tpu.matmul %2, %17, %cst_16 {dimension_numbers = #tpu.dot_dimension_numbers<[1], [0], [0], [1], [0, 0, 1, 1], [], []>} : vector<32x32xf32>, vector<32x128xf32>, vector<32x128xf32> -> vector<32x128xf32>
    %19 = vector.broadcast %3 : vector<32x1xf32> to vector<32x128xf32>
    %20 = arith.addf %18, %19 : vector<32x128xf32>
    %cst_17 = arith.constant 5.000000e-01 : f32
    %21 = vector.broadcast %cst_17 : f32 to vector<32x128xf32>
    %22 = arith.mulf %21, %20 : vector<32x128xf32>
    %cst_18 = arith.constant 5.000000e-01 : f32
    %23 = vector.broadcast %cst_18 : f32 to vector<32x128xf32>
    %24 = arith.mulf %23, %20 : vector<32x128xf32>
    %25 = math.tanh %24 : vector<32x128xf32>
    %cst_19 = arith.constant 1.000000e+00 : f32
    %26 = vector.broadcast %cst_19 : f32 to vector<32x128xf32>
    %27 = arith.addf %26, %25 : vector<32x128xf32>
    %28 = arith.mulf %22, %27 : vector<32x128xf32>
    %29 = vector.broadcast %4 : vector<32x1xf32> to vector<32x128xf32>
    %30 = arith.mulf %28, %29 : vector<32x128xf32>
    %cst_20 = arith.constant dense<0.000000e+00> : vector<128xf32>
    %31 = vector.multi_reduction <add>, %30, %cst_20 [0] : vector<32x128xf32> to vector<128xf32>
    %32 = vector.shape_cast %31 : vector<128xf32> to vector<1x128xf32>
    %33 = vector.broadcast %5 : vector<1x1xf32> to vector<1x128xf32>
    %34 = arith.addf %32, %33 : vector<1x128xf32>
    %c0_21 = arith.constant 0 : index
    %c0_22 = arith.constant 0 : index
    %35 = vector.load %arg8[%c0_21, %c0_22] : memref<1x128xf32, #tpu.memory_space<vmem>>, vector<1x128xf32>
    tpu.vector_store %arg8[%c0_21, %c0_22], %34 {strides = array<i32>} : memref<1x128xf32, #tpu.memory_space<vmem>>, vector<1x128xf32>,
    return
  }
  func.func @transform_0(%arg0: i32) -> (i32, i32) {
    %c0_i32 = arith.constant 0 : i32
    %c0_i32_0 = arith.constant 0 : i32
    return %arg0, %c0_i32 : i32, i32
  }
  func.func @transform_1(%arg0: i32) -> (i32, i32) {
    %c0_i32 = arith.constant 0 : i32
    %c0_i32_0 = arith.constant 0 : i32
    %c0_i32_1 = arith.constant 0 : i32
    return %c0_i32, %c0_i32_0 : i32, i32
  }
  func.func @transform_2(%arg0: i32) -> (i32, i32) {
    %c0_i32 = arith.constant 0 : i32
    %c0_i32_0 = arith.constant 0 : i32
    %c0_i32_1 = arith.constant 0 : i32
    return %c0_i32, %c0_i32_0 : i32, i32
  }
  func.func @transform_3(%arg0: i32) -> (i32, i32) {
    %c0_i32 = arith.constant 0 : i32
    %c0_i32_0 = arith.constant 0 : i32
    %c0_i32_1 = arith.constant 0 : i32
    return %c0_i32, %c0_i32_0 : i32, i32
  }
  func.func @transform_4(%arg0: i32) -> (i32, i32) {
    %c0_i32 = arith.constant 0 : i32
    %c0_i32_0 = arith.constant 0 : i32
    %c0_i32_1 = arith.constant 0 : i32
    return %c0_i32, %c0_i32_0 : i32, i32
  }
  func.func @transform_5(%arg0: i32) -> (i32, i32) {
    %c0_i32 = arith.constant 0 : i32
    %c0_i32_0 = arith.constant 0 : i32
    %c0_i32_1 = arith.constant 0 : i32
    return %c0_i32, %c0_i32_0 : i32, i32
  }
  func.func @transform_6(%arg0: i32) -> (i32, i32) {
    %c0_i32 = arith.constant 0 : i32
    %c0_i32_0 = arith.constant 0 : i32
    %c0_i32_1 = arith.constant 0 : i32
    return %c0_i32, %c0_i32_0 : i32, i32
  }
  func.func @transform_7(%arg0: i32) -> (i32, i32) {
    %c0_i32 = arith.constant 0 : i32
    %c0_i32_0 = arith.constant 0 : i32
    return %c0_i32, %arg0 : i32, i32
  }
}

</mosaic_0001>

<llo_original>
// kernel: tpu_custom_call.1
$region0: #{tpu_custom_call.1}
  #allocation0 [shape = 'u32[]', space=smem, size = 0x4, offset = 0x4, fixed_abs, tag = 'smem constant byte address 0x4 - core index']
  #allocation1 [shape = 'u32[144,128]{1,0:T(1,128)}', space=vmem, size = 0x12000, scoped, tag = 'internal scratch']
  #allocation2 [shape = 'f32[1,1]{1,0:T(1,128)S(1)}', space=vmem, size = 0x200, scoped, tag = 'scoped memory for tpu_custom_call.1']
  %s0 = inlined_call_operand.vmem [shape: f32[128,16], index: 0, kind: input, shape index: {}]
  %s1 = inlined_call_operand.vmem [shape: f32[32,16], index: 1, kind: input, shape index: {}]
  %s2 = inlined_call_operand.vmem [shape: f32[32,1], index: 2, kind: input, shape index: {}]
  %s3 = inlined_call_operand.vmem [shape: f32[32,32], index: 3, kind: input, shape index: {}]
  %s4 = inlined_call_operand.vmem [shape: f32[32,1], index: 4, kind: input, shape index: {}]
  %s5 = inlined_call_operand.vmem [shape: f32[32,1], index: 5, kind: input, shape index: {}]
  %s6 = inlined_call_operand.<no memory space> [shape: f32[1,1], index: 6, kind: input, shape index: {}]
  %s7 = inlined_call_operand.hbm [shape: f32[1,128], index: 7, kind: output, shape index: {}]
  %s8 = sld [smem:[#allocation0]]
  $region38: #{tpu_custom_call.1} parent=0
    _
  %s10 = ssub.s32 1, %s8
  %s11 = scalar_select 0, %s10, %s8
  %v12 = vstv %s6
  %13 = vst [vmem:[#allocation2] sm:$0x1] %v12
  $region1: #{tpu_custom_call.1} parent=0
    #allocation3 [shape = 'u8[512]{0}', space=vmem, size = 0x400, scoped, tag = 'output window, operand 0, single buffered']
    #allocation4 [shape = 's32[1]{0}', space=sflag, size = 0x4, scoped, tag = 'scoped memory for tpu_custom_call.1']
    %14 = vsyncpa [#allocation4], 0
    // Predicated region
    $region2: #{tpu_custom_call.1} parent=1 // pred_check
      _
    $region3: #{tpu_custom_call.1} parent=1 // pred_check_branch
      %16 = sbr.rel (0) target = $region5
    $region4: #{tpu_custom_call.1} parent=1 // pred_region
      _
    $region5: #{tpu_custom_call.1} parent=1 // pred_fallthru
      _
    // Predicated region
    $region6: #{tpu_custom_call.1} parent=1 // pred_check
      _
    $region7: #{tpu_custom_call.1} parent=1 // pred_check_branch
      %18 = sbr.rel (0) target = $region9
    $region8: #{tpu_custom_call.1} parent=1 // pred_region
      _
    $region9: #{tpu_custom_call.1} parent=1 // pred_fallthru
      _
    // Predicated region
    $region10: #{tpu_custom_call.1} parent=1 // pred_check
      _
    $region11: #{tpu_custom_call.1} parent=1 // pred_check_branch
      %20 = sbr.rel (0) target = $region13
    $region12: #{tpu_custom_call.1} parent=1 // pred_region
      _
    $region13: #{tpu_custom_call.1} parent=1 // pred_fallthru
      _
    // Predicated region
    $region14: #{tpu_custom_call.1} parent=1 // pred_check
      _
    $region15: #{tpu_custom_call.1} parent=1 // pred_check_branch
      %22 = sbr.rel (0) target = $region17
    $region16: #{tpu_custom_call.1} parent=1 // pred_region
      _
    $region17: #{tpu_custom_call.1} parent=1 // pred_fallthru
      _
    // Predicated region
    $region18: #{tpu_custom_call.1} parent=1 // pred_check
      _
    $region19: #{tpu_custom_call.1} parent=1 // pred_check_branch
      %24 = sbr.rel (0) target = $region21
    $region20: #{tpu_custom_call.1} parent=1 // pred_region
      _
    $region21: #{tpu_custom_call.1} parent=1 // pred_fallthru
      _
    // Predicated region
    $region22: #{tpu_custom_call.1} parent=1 // pred_check
      _
    $region23: #{tpu_custom_call.1} parent=1 // pred_check_branch
      %26 = sbr.rel (0) target = $region25
    $region24: #{tpu_custom_call.1} parent=1 // pred_region
      _
    $region25: #{tpu_custom_call.1} parent=1 // pred_fallthru
      _
    // Predicated region
    $region26: #{tpu_custom_call.1} parent=1 // pred_check
      _
    $region27: #{tpu_custom_call.1} parent=1 // pred_check_branch
      %28 = sbr.rel (0) target = $region29
    $region28: #{tpu_custom_call.1} parent=1 // pred_region
      _
    $region29: #{tpu_custom_call.1} parent=1 // pred_fallthru
      _
    %v29 = vld [vmem:[%s1] sm:$0xff]
    %v30 = vld [vmem:[%s1 + $0x8] sm:$0xff]
    %v31 = vld [vmem:[%s1 + $0x10] sm:$0xff]
    %v32 = vld [vmem:[%s1 + $0x18] sm:$0xff]
    %v33 = vld [vmem:[%s2] sm:$0xff]
    %v34 = vld [vmem:[%s2 + $0x8] sm:$0xff]
    %v35 = vld [vmem:[%s2 + $0x10] sm:$0xff]
    %v36 = vld [vmem:[%s2 + $0x18] sm:$0xff]
    %v37 = vld [vmem:[%s3] sm:$0xff]
    %v38 = vld [vmem:[%s3 + $0x8] sm:$0xff]
    %v39 = vld [vmem:[%s3 + $0x10] sm:$0xff]
    %v40 = vld [vmem:[%s3 + $0x18] sm:$0xff]
    %v41 = vld [vmem:[%s4] sm:$0xff]
    %v42 = vld [vmem:[%s4 + $0x8] sm:$0xff]
    %v43 = vld [vmem:[%s4 + $0x10] sm:$0xff]
    %v44 = vld [vmem:[%s4 + $0x18] sm:$0xff]
    %v45 = vld [vmem:[%s5] sm:$0xff]
    %v46 = vld [vmem:[%s5 + $0x8] sm:$0xff]
    %v47 = vld [vmem:[%s5 + $0x10] sm:$0xff]
    %v48 = vld [vmem:[%s5 + $0x18] sm:$0xff]
    %v49 = vld [vmem:[#allocation2] sm:$0x1]
    %v50 = vld [vmem:[%s0] sm:$0xff]
    %v51 = vld [vmem:[%s0 + $0x8] sm:$0xff]
    %v52 = vld [vmem:[%s0 + $0x10] sm:$0xff]
    %v53 = vld [vmem:[%s0 + $0x18] sm:$0xff]
    %v54 = vld [vmem:[%s0 + $0x20] sm:$0xff]
    %v55 = vld [vmem:[%s0 + $0x28] sm:$0xff]
    %v56 = vld [vmem:[%s0 + $0x30] sm:$0xff]
    %v57 = vld [vmem:[%s0 + $0x38] sm:$0xff]
    %v58 = vld [vmem:[%s0 + $0x40] sm:$0xff]
    %v59 = vld [vmem:[%s0 + $0x48] sm:$0xff]
    %v60 = vld [vmem:[%s0 + $0x50] sm:$0xff]
    %v61 = vld [vmem:[%s0 + $0x58] sm:$0xff]
    %v62 = vld [vmem:[%s0 + $0x60] sm:$0xff]
    %v63 = vld [vmem:[%s0 + $0x68] sm:$0xff]
    %v64 = vld [vmem:[%s0 + $0x70] sm:$0xff]
    %v65 = vld [vmem:[%s0 + $0x78] sm:$0xff]
    %67 = vset.pattern.permute.xlu0 0
    %68 = vperm.xlu0 %67, %v33
    %v69 = vpop.permute.xlu0 %68
    %72 = vset.pattern.permute.xlu0 0
    %73 = vperm.xlu0 %72, %v34
    %v74 = vpop.permute.xlu0 %73
    %77 = vset.pattern.permute.xlu0 0
    %78 = vperm.xlu0 %77, %v35
    %v79 = vpop.permute.xlu0 %78
    %82 = vset.pattern.permute.xlu0 0
    %83 = vperm.xlu0 %82, %v36
    %v84 = vpop.permute.xlu0 %83
    %vm86 = vcmask 130048
    %v88 = vsel %vm86, %v29, 0
    %v91 = vsel %vm86, %v30, 0
    %v94 = vsel %vm86, %v31, 0
    %v97 = vsel %vm86, %v32, 0
    %v100 = vsel %vm86, %v50, 0
    %v103 = vsel %vm86, %v51, 0
    %v106 = vsel %vm86, %v52, 0
    %v109 = vsel %vm86, %v53, 0
    %v112 = vsel %vm86, %v54, 0
    %v115 = vsel %vm86, %v55, 0
    %v118 = vsel %vm86, %v56, 0
    %v121 = vsel %vm86, %v57, 0
    %v124 = vsel %vm86, %v58, 0
    %v127 = vsel %vm86, %v59, 0
    %v130 = vsel %vm86, %v60, 0
    %v133 = vsel %vm86, %v61, 0
    %v136 = vsel %vm86, %v62, 0
    %v139 = vsel %vm86, %v63, 0
    %v142 = vsel %vm86, %v64, 0
    %v145 = vsel %vm86, %v65, 0
    %147 = vmatprep.subr.mxu0 0.0
    %148 = vmatpush1.xpose.msra.mxu0 %v145
    %149 = vmatprep.subr.mxu0 0.0
    %150 = vmatpush1.xpose.msra.mxu0 %v142
    %151 = vmatprep.subr.mxu0 0.0
    %152 = vmatpush1.xpose.msra.mxu0 %v139
    %153 = vmatprep.subr.mxu0 0.0
    %154 = vmatpush1.xpose.msra.mxu0 %v136
    %155 = vmatprep.subr.mxu0 0.0
    %156 = vmatpush1.xpose.msra.mxu0 %v133
    %157 = vmatprep.subr.mxu0 0.0
    %158 = vmatpush1.xpose.msra.mxu0 %v130
    %159 = vmatprep.subr.mxu0 0.0
    %160 = vmatpush1.xpose.msra.mxu0 %v127
    %161 = vmatprep.subr.mxu0 0.0
    %162 = vmatpush1.xpose.msra.mxu0 %v124
    %163 = vmatprep.subr.mxu0 0.0
    %164 = vmatpush1.xpose.msra.mxu0 %v121
    %165 = vmatprep.subr.mxu0 0.0
    %166 = vmatpush1.xpose.msra.mxu0 %v118
    %167 = vmatprep.subr.mxu0 0.0
    %168 = vmatpush1.xpose.msra.mxu0 %v115
    %169 = vmatprep.subr.mxu0 0.0
    %170 = vmatpush1.xpose.msra.mxu0 %v112
    %171 = vmatprep.subr.mxu0 0.0
    %172 = vmatpush1.xpose.msra.mxu0 %v109
    %173 = vmatprep.subr.mxu0 0.0
    %174 = vmatpush1.xpose.msra.mxu0 %v106
    %175 = vmatprep.subr.mxu0 0.0
    %176 = vmatpush1.xpose.msra.mxu0 %v103
    %177 = vmatprep.subr.mxu0 0.0
    %178 = vmatpush1.xpose.msra.mxu0 %v100
    %179 = vmatprep.subr.mxu0 0.0
    %180 = vmatpush2.xpose.msra.mxu0 0.0
    %181 = vmatprep.subr.mxu0 0.0
    %182 = vmatpush2.xpose.msra.mxu0 0.0
    %183 = vmatprep.subr.mxu0 0.0
    %184 = vmatpush2.xpose.msra.mxu0 0.0
    %185 = vmatprep.subr.mxu0 0.0
    %186 = vmatpush2.xpose.msra.mxu0 0.0
    %187 = vmatprep.subr.mxu0 0.0
    %188 = vmatpush2.xpose.msra.mxu0 0.0
    %189 = vmatprep.subr.mxu0 0.0
    %190 = vmatpush2.xpose.msra.mxu0 0.0
    %191 = vmatprep.subr.mxu0 0.0
    %192 = vmatpush2.xpose.msra.mxu0 0.0
    %193 = vmatprep.subr.mxu0 0.0
    %194 = vmatpush2.xpose.msra.mxu0 0.0
    %195 = vmatprep.subr.mxu0 0.0
    %196 = vmatpush2.xpose.msra.mxu0 0.0
    %197 = vmatprep.subr.mxu0 0.0
    %198 = vmatpush2.xpose.msra.mxu0 0.0
    %199 = vmatprep.subr.mxu0 0.0
    %200 = vmatpush2.xpose.msra.mxu0 0.0
    %201 = vmatprep.subr.mxu0 0.0
    %202 = vmatpush2.xpose.msra.mxu0 0.0
    %203 = vmatprep.subr.mxu0 0.0
    %204 = vmatpush2.xpose.msra.mxu0 0.0
    %205 = vmatprep.subr.mxu0 0.0
    %206 = vmatpush2.xpose.msra.mxu0 0.0
    %207 = vmatprep.subr.mxu0 0.0
    %208 = vmatpush2.xpose.msra.mxu0 0.0
    %209 = vmatprep.subr.mxu0 0.0
    %210 = vmatpush2.xpose.msra.mxu0 0.0
    %211 = vmatprep.mubr.f32.mxu0 0.0
    %212 = vmatmul.mubr.f32.gmra.mxu0 %v88
    %v213 = vpop.f32.mrf.mxu0
    %v214 = vadd.f32 %v69, %v213
    %v215 = vpop.f32.mrf.mxu0
    %216 = vmatprep.mubr.f32.mxu0 0.0
    %217 = vmatmul.mubr.f32.gmra.mxu0 %v91
    %v218 = vpop.f32.mrf.mxu0
    %v219 = vadd.f32 %v74, %v218
    %v220 = vpop.f32.mrf.mxu0
    %221 = vmatprep.mubr.f32.mxu0 0.0
    %222 = vmatmul.mubr.f32.gmra.mxu0 %v94
    %v223 = vpop.f32.mrf.mxu0
    %v224 = vadd.f32 %v79, %v223
    %v225 = vpop.f32.mrf.mxu0
    %226 = vmatprep.mubr.f32.mxu0 0.0
    %227 = vmatmul.mubr.f32.gmra.mxu0 %v97
    %v228 = vpop.f32.mrf.mxu0
    %v229 = vadd.f32 %v84, %v228
    %v230 = vpop.f32.mrf.mxu0
    %231 = vdwg.mxu0
    %v232 = vmul.f32 %v214, 0.5
    %v233 = vmul.f32 %v219, 0.5
    %v234 = vmul.f32 %v224, 0.5
    %v235 = vmul.f32 %v229, 0.5
    %v236 = vtanh.pop %v232
    %v237 = vtanh.pop %v233
    %v238 = vtanh.pop %v234
    %v239 = vtanh.pop %v235
    %v240 = vadd.f32 %v236, 1.0
    %v241 = vadd.f32 %v237, 1.0
    %v242 = vadd.f32 %v238, 1.0
    %v243 = vadd.f32 %v239, 1.0
    %v244 = vmul.f32 %v232, %v240
    %v245 = vmul.f32 %v233, %v241
    %v246 = vmul.f32 %v234, %v242
    %v247 = vmul.f32 %v235, %v243
    %249 = vset.pattern.permute.xlu0 0
    %250 = vperm.xlu0 %249, %v41
    %v251 = vpop.permute.xlu0 %250
    %254 = vset.pattern.permute.xlu0 0
    %255 = vperm.xlu0 %254, %v42
    %v256 = vpop.permute.xlu0 %255
    %259 = vset.pattern.permute.xlu0 0
    %260 = vperm.xlu0 %259, %v43
    %v261 = vpop.permute.xlu0 %260
    %264 = vset.pattern.permute.xlu0 0
    %265 = vperm.xlu0 %264, %v44
    %v266 = vpop.permute.xlu0 %265
    %vm268 = vcmask 261120
    %v270 = vsel %vm268, %v37, 0
    %v273 = vsel %vm268, %v38, 0
    %v276 = vsel %vm268, %v39, 0
    %v279 = vsel %vm268, %v40, 0
    %281 = vmatprep.subr.mxu0 0.0
    %282 = vmatpush1.msra.mxu0 0.0
    %283 = vmatprep.subr.mxu0 0.0
    %284 = vmatpush1.msra.mxu0 0.0
    %285 = vmatprep.subr.mxu0 0.0
    %286 = vmatpush1.msra.mxu0 0.0
    %287 = vmatprep.subr.mxu0 0.0
    %288 = vmatpush1.msra.mxu0 0.0
    %289 = vmatprep.subr.mxu0 0.0
    %290 = vmatpush1.msra.mxu0 0.0
    %291 = vmatprep.subr.mxu0 0.0
    %292 = vmatpush1.msra.mxu0 0.0
    %293 = vmatprep.subr.mxu0 0.0
    %294 = vmatpush1.msra.mxu0 0.0
    %295 = vmatprep.subr.mxu0 0.0
    %296 = vmatpush1.msra.mxu0 0.0
    %297 = vmatprep.subr.mxu0 0.0
    %298 = vmatpush1.msra.mxu0 0.0
    %299 = vmatprep.subr.mxu0 0.0
    %300 = vmatpush1.msra.mxu0 0.0
    %301 = vmatprep.subr.mxu0 0.0
    %302 = vmatpush1.msra.mxu0 0.0
    %303 = vmatprep.subr.mxu0 0.0
    %304 = vmatpush1.msra.mxu0 0.0
    %305 = vmatprep.subr.mxu0 0.0
    %306 = vmatpush1.msra.mxu0 %v247
    %307 = vmatprep.subr.mxu0 0.0
    %308 = vmatpush1.msra.mxu0 %v246
    %309 = vmatprep.subr.mxu0 0.0
    %310 = vmatpush1.msra.mxu0 %v245
    %311 = vmatprep.subr.mxu0 0.0
    %312 = vmatpush1.msra.mxu0 %v244
    %313 = vmatprep.subr.mxu0 0.0
    %314 = vmatpush2.msra.mxu0 0.0
    %315 = vmatprep.subr.mxu0 0.0
    %316 = vmatpush2.msra.mxu0 0.0
    %317 = vmatprep.subr.mxu0 0.0
    %318 = vmatpush2.msra.mxu0 0.0
    %319 = vmatprep.subr.mxu0 0.0
    %320 = vmatpush2.msra.mxu0 0.0
    %321 = vmatprep.subr.mxu0 0.0
    %322 = vmatpush2.msra.mxu0 0.0
    %323 = vmatprep.subr.mxu0 0.0
    %324 = vmatpush2.msra.mxu0 0.0
    %325 = vmatprep.subr.mxu0 0.0
    %326 = vmatpush2.msra.mxu0 0.0
    %327 = vmatprep.subr.mxu0 0.0
    %328 = vmatpush2.msra.mxu0 0.0
    %329 = vmatprep.subr.mxu0 0.0
    %330 = vmatpush2.msra.mxu0 0.0
    %331 = vmatprep.subr.mxu0 0.0
    %332 = vmatpush2.msra.mxu0 0.0
    %333 = vmatprep.subr.mxu0 0.0
    %334 = vmatpush2.msra.mxu0 0.0
    %335 = vmatprep.subr.mxu0 0.0
    %336 = vmatpush2.msra.mxu0 0.0
    %337 = vmatprep.subr.mxu0 0.0
    %338 = vmatpush2.msra.mxu0 0.0
    %339 = vmatprep.subr.mxu0 0.0
    %340 = vmatpush2.msra.mxu0 0.0
    %341 = vmatprep.subr.mxu0 0.0
    %342 = vmatpush2.msra.mxu0 0.0
    %343 = vmatprep.subr.mxu0 0.0
    %344 = vmatpush2.msra.mxu0 0.0
    %345 = vmatprep.mubr.f32.mxu0 0.0
    %346 = vmatmul.mubr.f32.gmra.mxu0 %v270
    %v347 = vpop.f32.mrf.mxu0
    %v348 = vadd.f32 %v251, %v347
    %v349 = vpop.f32.mrf.mxu0
    %350 = vmatprep.mubr.f32.mxu0 0.0
    %351 = vmatmul.mubr.f32.gmra.mxu0 %v273
    %v352 = vpop.f32.mrf.mxu0
    %v353 = vadd.f32 %v256, %v352
    %v354 = vpop.f32.mrf.mxu0
    %355 = vmatprep.mubr.f32.mxu0 0.0
    %356 = vmatmul.mubr.f32.gmra.mxu0 %v276
    %v357 = vpop.f32.mrf.mxu0
    %v358 = vadd.f32 %v261, %v357
    %v359 = vpop.f32.mrf.mxu0
    %360 = vmatprep.mubr.f32.mxu0 0.0
    %361 = vmatmul.mubr.f32.gmra.mxu0 %v279
    %v362 = vpop.f32.mrf.mxu0
    %v363 = vadd.f32 %v266, %v362
    %v364 = vpop.f32.mrf.mxu0
    %365 = vdwg.mxu0
    %v366 = vmul.f32 %v348, 0.5
    %v367 = vmul.f32 %v353, 0.5
    %v368 = vmul.f32 %v358, 0.5
    %v369 = vmul.f32 %v363, 0.5
    %v370 = vtanh.pop %v366
    %v371 = vtanh.pop %v367
    %v372 = vtanh.pop %v368
    %v373 = vtanh.pop %v369
    %v374 = vadd.f32 %v370, 1.0
    %v375 = vadd.f32 %v371, 1.0
    %v376 = vadd.f32 %v372, 1.0
    %v377 = vadd.f32 %v373, 1.0
    %v378 = vmul.f32 %v366, %v374
    %v379 = vmul.f32 %v367, %v375
    %v380 = vmul.f32 %v368, %v376
    %v381 = vmul.f32 %v369, %v377
    %383 = vset.pattern.permute.xlu0 0
    %384 = vperm.xlu0 %383, %v45
    %v385 = vpop.permute.xlu0 %384
    %388 = vset.pattern.permute.xlu0 0
    %389 = vperm.xlu0 %388, %v46
    %v390 = vpop.permute.xlu0 %389
    %393 = vset.pattern.permute.xlu0 0
    %394 = vperm.xlu0 %393, %v47
    %v395 = vpop.permute.xlu0 %394
    %398 = vset.pattern.permute.xlu0 0
    %399 = vperm.xlu0 %398, %v48
    %v400 = vpop.permute.xlu0 %399
    %v402 = vmul.f32 %v378, %v385
    %v403 = vmul.f32 %v379, %v390
    %v404 = vmul.f32 %v380, %v395
    %v405 = vmul.f32 %v381, %v400
    %v406 = vadd.f32 %v402, %v403
    %v407 = vadd.f32 %v406, %v404
    %v408 = vadd.f32 %v407, %v405
    %v409 = vrot.slane %v408, 4
    %v410 = vadd.f32 %v408, %v409
    %v411 = vrot.slane %v410, 2
    %v412 = vadd.f32 %v410, %v411
    %v413 = vrot.slane %v412, 1
    %v414 = vadd.f32 %v412, %v413
    %416 = vset.pattern.permute.xlu0 0
    %417 = vperm.xlu0 %416, %v49
    %v418 = vpop.permute.xlu0 %417
    %v420 = vlaneseq
    %v421 = vshrl.u32 %v420, 7
    %v422 = vsub.s32 0, %v421
    %v423 = vrot.slane %v418, %v422
    %v424 = vadd.f32 %v414, %v423
    %425 = vst [vmem:[#allocation3] sm:$0x1] %v424
    // Predicated region
    $region30: #{tpu_custom_call.1} parent=1 // pred_check
      _
    $region31: #{tpu_custom_call.1} parent=1 // pred_check_branch
      %427 = sbr.rel (0) target = $region33
    $region32: #{tpu_custom_call.1} parent=1 // pred_region
      %s429 = ssub.s32 16, 16
      %430 = vsyncadd [#allocation4], %s429
      %s432 = sshll.u32 [#allocation3], 4
      %s433 = int_to_ptr.vmem [resolvable:$true] %s432
      %435 = dma.vmem_to_hbm [thread:$0]  %s433, 16, %s7, [#allocation4]
    $region33: #{tpu_custom_call.1} parent=1 // pred_fallthru
      _
    // Predicated region
    $region34: #{tpu_custom_call.1} parent=1 // pred_check
      _
    $region35: #{tpu_custom_call.1} parent=1 // pred_check_branch
      %437 = sbr.rel (0) target = $region37
    $region36: #{tpu_custom_call.1} parent=1 // pred_region
      %438 = dma.done [#allocation4], 16
    $region37: #{tpu_custom_call.1} parent=1 // pred_fallthru
      _
    %439 = vsyncpa [#allocation4], 1

</llo_original>
